<compile_context>
chip_gen: v6e
topology: v6e:2x2x1
jax: 0.10.0
libtpu: 0.0.40
codegen_flags: <defaults>
</compile_context>

<pallas_src>
import functools

import jax
import jax.numpy as jnp
from jax.experimental import pallas as pl
from jax.experimental.pallas import tpu as pltpu

_LANES = 128


def _integer_pow(base, n: int):
    """base ** n for small non-negative integer n, as unrolled VPU multiplies."""
    if n == 0:
        return jnp.ones_like(base)
    result = None
    cur = base
    while n:
        if n & 1:
            result = cur if result is None else result * cur
        n >>= 1
        if n:
            cur = cur * cur
    return result


def _default_n_split() -> int:
    """2 on v7x (two TensorCores per chip), 1 on v5e/v6e (single TensorCore)."""
    try:
        kind = jax.devices()[0].device_kind.lower()
    except Exception:  # pragma: no cover - defensive
        return 1
    return 2 if "7" in kind else 1
    # TODO(synk): on v7x, verify in xprof that the leading "parallel" axis really
    # shards across both TensorCores; if not, switch to pltpu.CORE_PARALLEL.


def _choose_tiling(rows: int, tile_cap: int, n_split: int):
    """Pick (tile_r, steps, n_split, rows_total) with rows_total = n_split*steps*tile_r.

    Prefers an exact cover of `rows` (so the wrapper never has to copy/pad x)
    and big tiles.  Blocks that are not the full array use 32-row alignment so
    both the f32 and int8 streams get native tilings.
    """
    tile_cap = max(32, (int(tile_cap) // 32) * 32)
    splits = sorted({max(1, int(n_split)), 1}, reverse=True)

    # exact cover, one block per split (block may equal full array dims)
    for ns in splits:
        if rows % ns:
            continue
        rps = rows // ns
        if rps <= tile_cap and (ns == 1 or rps % 32 == 0):
            return rps, 1, ns, rows

    # exact cover, several blocks per split (32-row aligned tile dividing rows)
    for ns in splits:
        if rows % ns:
            continue
        rps = rows // ns
        t = min(tile_cap, (rps // 32) * 32)
        while t >= 256:
            if rps % t == 0:
                return t, rps // t, ns, rows
            t -= 32

    # fallback: pad rows up to a tile multiple (one wrapper-side copy)
    ns = splits[0]
    per_split = -(-rows // ns)
    tile_r = min(tile_cap, max(32, -(-per_split // 32) * 32))
    steps = -(-rows // (ns * tile_r))
    return tile_r, steps, ns, ns * steps * tile_r


def _focal_loss_kernel(x_ref, oh_ref, w_ref, num_ref, *, gamma: float):
    """One grid step processes a lane-dense (tile_r, 128) slab (128//C samples/row).

    The (1, 128) numerator row lives in the resident output block (same block
    index for every step of the inner grid axis), so the only per-step VMEM
    traffic is the two input tiles.
    """
    j = pl.program_id(1)

    @pl.when(j == 0)
    def _init():
        num_ref[...] = jnp.zeros_like(num_ref)

    x = x_ref[...].astype(jnp.float32)          # (tile_r, 128) packed log-probs
    onehot = oh_ref[...].astype(jnp.float32)    # (tile_r, 128) 0/1 one-hot (int8 in HBM)
    w = w_ref[...]                              # (2, 128): [(1-smooth)*w, (smooth/C)*w]

    # focal term pow(1 - exp(x), onehot * gamma): with base = 1 - onehot*exp(x)
    # the off-target base is already 1 (== pow(..., 0)), so a plain power of
    # `base` matches the reference for any gamma.  Integer gamma (default 2.0)
    # is unrolled into VPU multiplies -> no transcendental pow, no NaN hazard.
    # (For odd integer gamma, base can be a ~-1e-7 rounding residue; its cube is
    #  O(1e-21) and matches PyTorch's pow, so no clamp is added here.)
    base = 1.0 - onehot * jnp.exp(x)
    g = float(gamma)
    if g.is_integer() and 0.0 <= g <= 16.0:
        focal = _integer_pow(base, int(g))
    else:
        focal = jnp.power(jnp.maximum(base, 0.0), jnp.float32(g))

    winput = focal * x                                         # focal-reweighted log-probs
    # sm_target * weight == onehot * w_main + w_smooth  (constants folded in wrapper)
    contrib = (onehot * w[0:1, :] + w[1:2, :]) * winput
    # (zero-padded tail: x == 0 and onehot == 0 -> winput == 0 -> contributes nothing)

    # vreg adds down the sublane axis + one tiny XLU reduce; accumulate into the
    # resident (1, 128) output row.
    num_ref[0] += jnp.sum(contrib, axis=0, keepdims=True)


def focal_loss_tpu(x, target, weight=None, *, smooth: float = 0.0,
                   gamma: float = 2.0, tile_rows: int = 2048, n_split=None):
    """Pallas TPU implementation of FocalLoss.forward (reduce=True).

    x:      (N, C) float log-probabilities (f32 or bf16; cast to f32 in-kernel)
    target: (N,)   int class indices
    weight: (C,)   optional per-class weights (None -> unweighted; for
            reduce=True this equals the weighted formula with ones)
    """
    x = jnp.asarray(x)
    target = jnp.asarray(target, jnp.int32)
    N, C = x.shape
    if C > _LANES or _LANES % C != 0:
        # TODO(synk): class counts that do not divide 128 need a padded-class path.
        raise NotImplementedError("focal_loss_tpu requires C to divide 128")
    if weight is None:
        weight_arr = jnp.ones((C,), jnp.float32)
    else:
        weight_arr = jnp.asarray(weight, jnp.float32).reshape(C)

    if n_split is None:
        n_split = _default_n_split()

    samples_per_row = _LANES // C
    total = N * C
    rows = -(-total // _LANES)
    tile_r, steps, ns, rows_total = _choose_tiling(rows, tile_rows, n_split)
    total_pad = rows_total * _LANES

    # lane-dense repack: row-major flatten of (N, C) viewed as (rows_total, 128).
    # The reshape is metadata-only whenever the grid tiles N*C exactly; only the
    # ragged case pays a zero-pad copy.
    x_flat = x.reshape(-1)
    onehot_flat = (target[:, None] == jnp.arange(C, dtype=jnp.int32)[None, :]
                   ).astype(jnp.int8).reshape(-1)
    if total_pad != total:
        pad = total_pad - total
        x_flat = jnp.pad(x_flat, (0, pad))            # padded x == 0
        onehot_flat = jnp.pad(onehot_flat, (0, pad))  # padded onehot == 0
    x2 = x_flat.reshape(rows_total, _LANES)
    oh2 = onehot_flat.reshape(rows_total, _LANES)

    # per-lane class weight rows: lane l gets weight[l % C]; smoothing folded in.
    w_lane = jnp.tile(weight_arr, samples_per_row)
    w2 = jnp.stack([(1.0 - float(smooth)) * w_lane,
                    (float(smooth) / C) * w_lane]).astype(jnp.float32)  # (2, 128)

    kernel = functools.partial(_focal_loss_kernel, gamma=float(gamma))

    num = pl.pallas_call(
        kernel,
        out_shape=jax.ShapeDtypeStruct((ns, 1, _LANES), jnp.float32),
        grid_spec=pltpu.PrefetchScalarGridSpec(
            num_scalar_prefetch=0,
            grid=(ns, steps),
            in_specs=[
                pl.BlockSpec((tile_r, _LANES), lambda i, j: (i * steps + j, 0)),
                pl.BlockSpec((tile_r, _LANES), lambda i, j: (i * steps + j, 0)),
                pl.BlockSpec((2, _LANES), lambda i, j: (0, 0)),
            ],
            out_specs=pl.BlockSpec((1, 1, _LANES), lambda i, j: (i, 0, 0)),
        ),
        compiler_params=pltpu.CompilerParams(
            dimension_semantics=("parallel", "arbitrary")),
    )(x2, oh2, w2)

    # denominator on the wrapper side: sum of weight[target] over the N valid
    # samples (naturally ignores any padded tail).  For weight=None this is N,
    # matching the unweighted reduce=True branch (-sum(...)/N).
    den = jnp.sum(jnp.take(weight_arr, target))
    return -(jnp.sum(num) / den)
    # TODO(synk): reduce=False (per-sample vector loss) path not implemented; the
    # module default reduce=True (scalar) is what this kernel reproduces.
    # TODO(synk): smooth == 0.0 could be specialized to a gather of x[i, target[i]]
    # (C-fold less HBM traffic); kept on the general path for simplicity.


def focal_loss_ref(x, target, weight, smooth, gamma):
    """Pure-JAX reference mirroring the PyTorch code (reduce=True, weighted)."""
    C = x.shape[1]
    onehot = jax.nn.one_hot(target, C, dtype=jnp.float32)
    # clamp: log_softmax rounding can make 1 - exp(x) ~ -1e-7; effect < 1e-12
    base = jnp.maximum(1.0 - jnp.exp(x), 0.0)
    pow_term = jnp.where(onehot > 0, base ** gamma, 1.0)
    winput = pow_term * x
    sm_target = (1.0 - smooth) * onehot + smooth / C
    w = weight.reshape(1, C)
    return -(sm_target * w * winput).sum() / (onehot * w).sum()


if __name__ == "__main__":
    key = jax.random.PRNGKey(0)
    k1, k2, k3, k4 = jax.random.split(key, 4)

    # case 1: weighted, smoothed, gamma=2 (module defaults); N=64 samples, C=8 classes
    # N*C = 512 is a multiple of 128 -> pad-free metadata-only repack path.
    N, C = 64, 8
    x = jax.nn.log_softmax(jax.random.normal(k1, (N, C), jnp.float32), axis=-1)
    target = jax.random.randint(k2, (N,), 0, C, jnp.int32)
    weight = jnp.linspace(0.5, 1.5, C, dtype=jnp.float32)

    loss = jax.block_until_ready(
        focal_loss_tpu(x, target, weight, smooth=0.1, gamma=2.0))
    ref = focal_loss_ref(x, target, weight, 0.1, 2.0)
    assert jnp.allclose(loss, ref, rtol=1e-5, atol=1e-5), (loss, ref)

    # case 2: unweighted, no smoothing, gamma=3, N*C not a multiple of 128
    # (exercises the zero-padded ragged-tail path and the integer-pow unroll)
    N2 = 50
    x_b = jax.nn.log_softmax(jax.random.normal(k3, (N2, C), jnp.float32), axis=-1)
    target_b = jax.random.randint(k4, (N2,), 0, C, jnp.int32)
    loss_b = jax.block_until_ready(
        focal_loss_tpu(x_b, target_b, None, smooth=0.0, gamma=3.0))
    ref_b = focal_loss_ref(x_b, target_b, jnp.ones((C,), jnp.float32), 0.0, 3.0)
    assert jnp.allclose(loss_b, ref_b, rtol=1e-5, atol=1e-5), (loss_b, ref_b)

    print("KERNEL_OK")
</pallas_src>

<mosaic_0001>
module attributes {stable_mosaic.version = 11 : i64} {
  func.func @_focal_loss_kernel(%arg0: i32, %arg1: i32, %arg2: memref<4x128xf32, #tpu.memory_space<vmem>>, %arg3: memref<4x128xi8, #tpu.memory_space<vmem>>, %arg4: memref<2x128xf32, #tpu.memory_space<vmem>>, %arg5: memref<1x1x128xf32, #tpu.memory_space<vmem>>) attributes {dimension_semantics = [#tpu.dimension_semantics<parallel>, #tpu.dimension_semantics<arbitrary>], iteration_bounds = array<i64: 1, 1>, scalar_prefetch = 0 : i64, scratch_operands = 0 : i64, tpu.core_type = #tpu.core_type<tc>, window_params = [{transform_indices = @transform_0, window_bounds = array<i64: 4, 128>}, {transform_indices = @transform_1, window_bounds = array<i64: 4, 128>}, {pipeline_mode = #tpu.pipeline_mode<synchronous>, transform_indices = @transform_2, window_bounds = array<i64: 2, 128>}, {transform_indices = @transform_3, window_bounds = array<i64: 1, 1, 128>}]} {
    %c0_i32 = arith.constant 0 : i32
    %0 = arith.cmpi eq, %arg1, %c0_i32 : i32
    %1 = arith.extui %0 : i1 to i32
    %c0_i32_0 = arith.constant 0 : i32
    %2 = arith.cmpi ne, %1, %c0_i32_0 : i32
    scf.if %2 {
      %cst_13 = arith.constant 0.000000e+00 : f32
      %28 = vector.broadcast %cst_13 : f32 to vector<1x1x128xf32>
      %c0_14 = arith.constant 0 : index
      %c0_15 = arith.constant 0 : index
      %c0_16 = arith.constant 0 : index
      %29 = vector.load %arg5[%c0_14, %c0_15, %c0_16] : memref<1x1x128xf32, #tpu.memory_space<vmem>>, vector<1x1x128xf32>
      tpu.vector_store %arg5[%c0_14, %c0_15, %c0_16], %28 {strides = array<i32>} : memref<1x1x128xf32, #tpu.memory_space<vmem>>, vector<1x1x128xf32>,
    } else {
    }
    %c0 = arith.constant 0 : index
    %c0_1 = arith.constant 0 : index
    %3 = vector.load %arg2[%c0, %c0_1] : memref<4x128xf32, #tpu.memory_space<vmem>>, vector<4x128xf32>
    %c0_2 = arith.constant 0 : index
    %c0_3 = arith.constant 0 : index
    %4 = vector.load %arg3[%c0_2, %c0_3] : memref<4x128xi8, #tpu.memory_space<vmem>>, vector<4x128xi8>
    %5 = arith.sitofp %4 : vector<4x128xi8> to vector<4x128xf32>
    %c0_4 = arith.constant 0 : index
    %c0_5 = arith.constant 0 : index
    %6 = vector.load %arg4[%c0_4, %c0_5] : memref<2x128xf32, #tpu.memory_space<vmem>>, vector<2x128xf32>
    %7 = math.exp %3 : vector<4x128xf32>
    %8 = arith.mulf %5, %7 : vector<4x128xf32>
    %cst = arith.constant 1.000000e+00 : f32
    %9 = vector.broadcast %cst : f32 to vector<4x128xf32>
    %10 = arith.subf %9, %8 : vector<4x128xf32>
    %11 = arith.mulf %10, %10 : vector<4x128xf32>
    %12 = arith.mulf %11, %3 : vector<4x128xf32>
    %13 = vector.extract_strided_slice %6 {offsets = [0, 0], sizes = [1, 128], strides = [1, 1]} : vector<2x128xf32> to vector<1x128xf32>
    %14 = vector.broadcast %13 : vector<1x128xf32> to vector<4x128xf32>
    %15 = arith.mulf %5, %14 : vector<4x128xf32>
    %16 = vector.extract_strided_slice %6 {offsets = [1, 0], sizes = [1, 128], strides = [1, 1]} : vector<2x128xf32> to vector<1x128xf32>
    %17 = vector.broadcast %16 : vector<1x128xf32> to vector<4x128xf32>
    %18 = arith.addf %15, %17 : vector<4x128xf32>
    %19 = arith.mulf %18, %12 : vector<4x128xf32>
    %c0_6 = arith.constant 0 : index
    %c0_7 = arith.constant 0 : index
    %c0_8 = arith.constant 0 : index
    %20 = vector.load %arg5[%c0_6, %c0_7, %c0_8] : memref<1x1x128xf32, #tpu.memory_space<vmem>>, vector<1x1x128xf32>
    %21 = vector.shape_cast %20 : vector<1x1x128xf32> to vector<1x128xf32>
    %cst_9 = arith.constant dense<0.000000e+00> : vector<128xf32>
    %22 = vector.multi_reduction <add>, %19, %cst_9 [0] : vector<4x128xf32> to vector<128xf32>
    %23 = vector.shape_cast %22 : vector<128xf32> to vector<1x128xf32>
    %24 = arith.addf %21, %23 : vector<1x128xf32>
    %c0_10 = arith.constant 0 : index
    %c0_11 = arith.constant 0 : index
    %c0_12 = arith.constant 0 : index
    %25 = vector.load %arg5[%c0_10, %c0_11, %c0_12] : memref<1x1x128xf32, #tpu.memory_space<vmem>>, vector<1x1x128xf32>
    %26 = vector.shape_cast %25 : vector<1x1x128xf32> to vector<1x128xf32>
    %27 = vector.shape_cast %24 : vector<1x128xf32> to vector<1x1x128xf32>
    tpu.vector_store %arg5[%c0_10, %c0_11, %c0_12], %27 {strides = array<i32>} : memref<1x1x128xf32, #tpu.memory_space<vmem>>, vector<1x1x128xf32>,
    return
  }
  func.func @transform_0(%arg0: i32, %arg1: i32) -> (i32, i32) {
    %c1_i32 = arith.constant 1 : i32
    %0 = arith.muli %arg0, %c1_i32 : i32
    %1 = arith.addi %0, %arg1 : i32
    %c0_i32 = arith.constant 0 : i32
    %c0_i32_0 = arith.constant 0 : i32
    return %1, %c0_i32 : i32, i32
  }
  func.func @transform_1(%arg0: i32, %arg1: i32) -> (i32, i32) {
    %c1_i32 = arith.constant 1 : i32
    %0 = arith.muli %arg0, %c1_i32 : i32
    %1 = arith.addi %0, %arg1 : i32
    %c0_i32 = arith.constant 0 : i32
    %c0_i32_0 = arith.constant 0 : i32
    return %1, %c0_i32 : i32, i32
  }
  func.func @transform_2(%arg0: i32, %arg1: i32) -> (i32, i32) {
    %c0_i32 = arith.constant 0 : i32
    %c0_i32_0 = arith.constant 0 : i32
    %c0_i32_1 = arith.constant 0 : i32
    return %c0_i32, %c0_i32_0 : i32, i32
  }
  func.func @transform_3(%arg0: i32, %arg1: i32) -> (i32, i32, i32) {
    %c0_i32 = arith.constant 0 : i32
    %c0_i32_0 = arith.constant 0 : i32
    %c0_i32_1 = arith.constant 0 : i32
    return %arg0, %c0_i32, %c0_i32_0 : i32, i32, i32
  }
}

</mosaic_0001>

<llo_original>
// kernel: tpu_custom_call.1
$region0: #{tpu_custom_call.1}
  #allocation0 [shape = 'u32[]', space=smem, size = 0x4, offset = 0x4, fixed_abs, tag = 'smem constant byte address 0x4 - core index']
  #allocation1 [shape = 'u32[144,128]{1,0:T(1,128)}', space=vmem, size = 0x12000, scoped, tag = 'internal scratch']
  %s0 = inlined_call_operand.hbm [shape: f32[4,128], index: 0, kind: input, shape index: {}]
  %s1 = inlined_call_operand.vmem [shape: s8[4,128], index: 1, kind: input, shape index: {}]
  %s2 = inlined_call_operand.vmem [shape: f32[2,128], index: 2, kind: input, shape index: {}]
  %s3 = inlined_call_operand.hbm [shape: f32[1,1,128], index: 3, kind: output, shape index: {}]
  %s4 = sld [smem:[#allocation0]]
  $region30: #{tpu_custom_call.1} parent=0
    _
  %s6 = ssub.s32 1, %s4
  %s7 = scalar_select 0, %s6, %s4
  $region1: #{tpu_custom_call.1} parent=0
    #allocation2 [shape = 'u8[2048]{0}', space=vmem, size = 0x800, scoped, tag = 'input window, operand 0, single buffered']
    #allocation3 [shape = 's32[1]{0}', space=sflag, size = 0x4, scoped, tag = 'scoped memory for tpu_custom_call.1']
    #allocation4 [shape = 's32[1]{0}', space=sflag, size = 0x4, scoped, tag = 'scoped memory for tpu_custom_call.1']
    #allocation5 [shape = 'u8[512]{0}', space=vmem, size = 0x400, scoped, tag = 'output window, operand 0, single buffered']
    %8 = vsyncpa [#allocation3], 0
    %9 = vsyncpa [#allocation4], 0
    // Predicated region
    $region2: #{tpu_custom_call.1} parent=1 // pred_check
      _
    $region3: #{tpu_custom_call.1} parent=1 // pred_check_branch
      %11 = sbr.rel (0) target = $region5
    $region4: #{tpu_custom_call.1} parent=1 // pred_region
      %s12 = sadd.s32 0, 0
      %s14 = ssub.s32 64, 64
      %15 = vsyncadd [#allocation3], %s14
      %s16 = smul.addr %s12, 64
      %s17 = scalar_lea.hbm %s0, %s16
      %s19 = sshll.u32 [#allocation2], 4
      %s20 = int_to_ptr.vmem [resolvable:$true] %s19
      %22 = dma.hbm_to_vmem [thread:$0]  %s17, 64, %s20, [#allocation3]
    $region5: #{tpu_custom_call.1} parent=1 // pred_fallthru
      _
    // Predicated region
    $region6: #{tpu_custom_call.1} parent=1 // pred_check
      _
    $region7: #{tpu_custom_call.1} parent=1 // pred_check_branch
      %24 = sbr.rel (0) target = $region9
    $region8: #{tpu_custom_call.1} parent=1 // pred_region
      %s25 = sadd.s32 0, 0
      %p26 = scmp.lt.s32.totalorder %s25, 0
      %s27 = scalar_select %p26, %s25, 0
      %s28 = scalar_lea.vmem %s1, %s27
      %s29 = sadd.s32 0, 0
    $region9: #{tpu_custom_call.1} parent=1 // pred_fallthru
      _
    // Predicated region
    $region10: #{tpu_custom_call.1} parent=1 // pred_check
      _
    $region11: #{tpu_custom_call.1} parent=1 // pred_check_branch
      %31 = sbr.rel (0) target = $region13
    $region12: #{tpu_custom_call.1} parent=1 // pred_region
      _
    $region13: #{tpu_custom_call.1} parent=1 // pred_fallthru
      _
    // Predicated region
    $region14: #{tpu_custom_call.1} parent=1 // pred_check
      _
    $region15: #{tpu_custom_call.1} parent=1 // pred_check_branch
      %33 = sbr.rel (0) target = $region17
    $region16: #{tpu_custom_call.1} parent=1 // pred_region
      %34 = dma.done [#allocation3], 64
    $region17: #{tpu_custom_call.1} parent=1 // pred_fallthru
      _
    %s35 = sadd.s32 0, 0
    %p36 = scmp.lt.s32.totalorder %s35, 0
    %s37 = scalar_select %p36, %s35, 0
    %s38 = scalar_lea.vmem %s1, %s37
    %s39 = sadd.s32 0, 0
    %s40 = sadd.s32 0, 0
    %p41 = scmp.lt.s32.totalorder %s40, 0
    %s42 = scalar_select %p41, %s40, 0
    %s43 = scalar_lea.vmem %s1, %s42
    %s44 = sadd.s32 0, 0
    %p45 = scmp.eq.s32.totalorder 0, 0
    // Predicated region
    $region18: #{tpu_custom_call.1} parent=1 // pred_check
      %p46 = pneg %p45
    $region19: #{tpu_custom_call.1} parent=1 // pred_check_branch
      %48 = sbr.rel (%p46) target = $region21
    $region20: #{tpu_custom_call.1} parent=1 // pred_region
      %49 = vst [vmem:[#allocation5] sm:$0x1] 0.0
    $region21: #{tpu_custom_call.1} parent=1 // pred_fallthru
      _
    %v50 = vld [vmem:[#allocation2] sm:$0xf]
    %v51 = vld [vmem:[%s43] sm:$0x1]
    %v52 = vunpack.c.0.s8 %v51
    %v53 = vcvt.s32.f32 %v52
    %v54 = vld [vmem:[%s2] sm:$0x3]
    %v55 = vmul.f32 %v50, 1.442695
    %v56 = vpow.pop %v55
    %v57 = vmul.f32 %v53, %v56
    %v58 = vsub.f32 1.0, %v57
    %v59 = vmul.f32 %v58, %v58
    %v60 = vmul.f32 %v59, %v50
    %v61 = vlaneseq
    %v62 = vshrl.u32 %v61, 7
    %v63 = vsub.s32 0, %v62
    %v64 = vrot.slane %v54, %v63
    %v65 = vmul.f32 %v53, %v64
    %v66 = vlaneseq
    %v67 = vshrl.u32 %v66, 7
    %v68 = vsub.s32 1, %v67
    %v69 = vrot.slane %v54, %v68
    %v70 = vadd.f32 %v65, %v69
    %v71 = vmul.f32 %v70, %v60
    %v72 = vld [vmem:[#allocation5] sm:$0x1]
    %vm73 = vcmask 1043456
    %v74 = vsel %vm73, %v71, 0.0
    %v75 = vrot.slane %v74, 4
    %v76 = vadd.f32 %v74, %v75
    %v77 = vrot.slane %v76, 2
    %v78 = vadd.f32 %v76, %v77
    %v79 = vrot.slane %v78, 1
    %v80 = vadd.f32 %v78, %v79
    %v81 = vadd.f32 %v72, %v80
    %82 = vst [vmem:[#allocation5] sm:$0x1] %v81
    // Predicated region
    $region22: #{tpu_custom_call.1} parent=1 // pred_check
      _
    $region23: #{tpu_custom_call.1} parent=1 // pred_check_branch
      %84 = sbr.rel (0) target = $region25
    $region24: #{tpu_custom_call.1} parent=1 // pred_region
      %s86 = ssub.s32 16, 16
      %87 = vsyncadd [#allocation4], %s86
      %s89 = sshll.u32 [#allocation5], 4
      %s90 = int_to_ptr.vmem [resolvable:$true] %s89
      %92 = dma.vmem_to_hbm [thread:$0]  %s90, 16, %s3, [#allocation4]
    $region25: #{tpu_custom_call.1} parent=1 // pred_fallthru
      _
    // Predicated region
    $region26: #{tpu_custom_call.1} parent=1 // pred_check
      _
    $region27: #{tpu_custom_call.1} parent=1 // pred_check_branch
      %94 = sbr.rel (0) target = $region29
    $region28: #{tpu_custom_call.1} parent=1 // pred_region
      %95 = dma.done [#allocation4], 16
    $region29: #{tpu_custom_call.1} parent=1 // pred_fallthru
      _
    %96 = vsyncpa [#allocation3], 1
    %97 = vsyncpa [#allocation4], 1

</llo_original>
